<compile_context>
chip_gen: v7x
topology: tpu7x:2x2x1
jax: 0.10.0
libtpu: 0.0.40
codegen_flags: <defaults>
</compile_context>

<pallas_src>
import jax
import jax.numpy as jnp
from jax.experimental import pallas as pl
from jax.experimental.pallas import tpu as pltpu


_VMEM_LIMIT_BYTES = 48 * 1024 * 1024   # scoped-VMEM limit: safe on v5e/v6e (128 MiB) and v7x (64 MiB/TC)
_VMEM_BUDGET_BYTES = 40 * 1024 * 1024  # target for all kernel buffers (headroom under the limit)


def _lsig_kernel(beta_ref, slope_ref, x_ref, o_ref):
    # beta_ref: (1, 1) f32 in SMEM; slope_ref: (1, Lt) f32; x_ref / o_ref: (Nt, Lt)
    beta = beta_ref[0, 0]
    s = slope_ref[...]                              # (1, Lt) f32
    x = x_ref[...].astype(jnp.float32)              # compute in f32
    y = beta * jax.nn.sigmoid(s * x)                # sublane broadcast of s, EUP sigmoid
    o_ref[...] = y.astype(o_ref.dtype)


def _choose_tiles(N, L, itemsize):
    """Pick (row_tile, lane_tile) for the (N, L) = (B*C, F*T) view.

    Budget covers: double-buffered x input + double-buffered output
    (Nt*Lt*itemsize each) + double-buffered (1, Lt) f32 slope row.
    """
    sub = max(8, 32 // itemsize)  # sublane packing: 8 f32, 16 bf16, 32 int8/fp8
    budget = _VMEM_BUDGET_BYTES

    def bufbytes(nt, lt):
        return 4 * nt * lt * itemsize + 2 * lt * 4

    # --- lane tile: full rows if they fit; otherwise split into 128-multiples
    #     (even when L % 128 != 0 — pl.cdiv handles the partial trailing block).
    if L <= 128 or bufbytes(sub, L) <= budget:
        Lt = L
    else:
        lt_max = budget // (4 * sub * itemsize + 8)
        Lt = max(128, (lt_max // 128) * 128)
        Lt = min(Lt, L)

    # --- row tile: as many sublane-aligned rows as fit the remaining budget.
    nt_max = max(1, (budget - 2 * Lt * 4) // (4 * Lt * itemsize))
    if nt_max >= N:
        Nt = N
    else:
        Nt = min(N, max(sub, (nt_max // sub) * sub))

    # --- megacore (v7x): guarantee >= 2 grid steps along a parallel axis when
    #     the whole tensor would otherwise be a single block.
    if Nt >= N and Lt >= L:
        if N >= 2 * sub:
            Nt = max(sub, (N // 2 // sub) * sub)
        elif L >= 256:
            Lt = max(128, (L // 2 // 128) * 128)

    return Nt, Lt


def learnable_sigmoid_2d(x, slope, beta=1.0):
    """x: (B, C, F, T); slope: (F, 1). Returns beta * sigmoid(slope * x)."""
    B, C, F, T = x.shape
    assert slope.shape == (F, 1)

    N, L = B * C, F * T
    itemsize = jnp.dtype(x.dtype).itemsize

    x2 = x.reshape(N, L)  # free reshape, no data movement
    # Expand (F, 1) slope once (tiny: F*T elements) into one lane-dense f32 row.
    slope_row = jnp.broadcast_to(slope.astype(jnp.float32), (F, T)).reshape(1, L)
    beta_arr = jnp.asarray(beta, dtype=jnp.float32).reshape(1, 1)

    Nt, Lt = _choose_tiles(N, L, itemsize)
    # Lane axis OUTER: slope block index is constant across inner row steps,
    # so it stays resident in VMEM instead of being re-fetched.
    grid = (pl.cdiv(L, Lt), pl.cdiv(N, Nt))

    cost = pl.CostEstimate(
        flops=5 * N * L,
        transcendentals=N * L,
        bytes_accessed=2 * N * L * itemsize + 4 * L + 4,
    )

    out = pl.pallas_call(
        _lsig_kernel,
        out_shape=jax.ShapeDtypeStruct((N, L), x.dtype),
        grid=grid,
        in_specs=[
            pl.BlockSpec(memory_space=pltpu.MemorySpace.SMEM),   # beta (1,1) scalar
            pl.BlockSpec((1, Lt), lambda j, i: (0, j)),          # slope row (resident over i)
            pl.BlockSpec((Nt, Lt), lambda j, i: (i, j)),         # x tile
        ],
        out_specs=pl.BlockSpec((Nt, Lt), lambda j, i: (i, j)),
        compiler_params=pltpu.CompilerParams(
            dimension_semantics=("parallel", "parallel"),
            vmem_limit_bytes=_VMEM_LIMIT_BYTES,
        ),
        cost_estimate=cost,
    )(beta_arr, slope_row, x2)

    return out.reshape(B, C, F, T)


if __name__ == "__main__":
    key = jax.random.PRNGKey(0)

    # Case 1: canonical small shape, F == in_features.
    B, C, F, T = 2, 4, 16, 16
    beta = 2.0
    x = jax.random.normal(key, (B, C, F, T), dtype=jnp.float32)
    slope = jnp.ones((F, 1), dtype=jnp.float32)  # matches nn.Parameter(torch.ones(F, 1))

    y = jax.block_until_ready(learnable_sigmoid_2d(x, slope, beta=beta))
    ref = beta * jax.nn.sigmoid(slope[None, None] * x)
    assert y.shape == (B, C, F, T)
    assert jnp.allclose(y, ref, atol=1e-6, rtol=1e-6)

    # Case 2: non-trivial slope + odd trailing dim (L = F*T not a multiple of 128).
    k1, k2 = jax.random.split(key)
    B2, C2, F2, T2 = 1, 3, 12, 10
    x2 = jax.random.normal(k1, (B2, C2, F2, T2), dtype=jnp.float32)
    slope2 = jax.random.normal(k2, (F2, 1), dtype=jnp.float32)
    beta2 = 0.7
    y2 = jax.block_until_ready(learnable_sigmoid_2d(x2, slope2, beta=beta2))
    ref2 = beta2 * jax.nn.sigmoid(slope2[None, None] * x2)
    assert jnp.allclose(y2, ref2, atol=1e-6, rtol=1e-6)

    print("KERNEL_OK")
</pallas_src>

<mosaic_0001>
module attributes {stable_mosaic.version = 11 : i64} {
  func.func @_lsig_kernel(%arg0: i32, %arg1: i32, %arg2: memref<1x1xf32, #tpu.memory_space<smem>>, %arg3: memref<1x128xf32, #tpu.memory_space<vmem>>, %arg4: memref<8x128xf32, #tpu.memory_space<vmem>>, %arg5: memref<8x128xf32, #tpu.memory_space<vmem>>) attributes {dimension_semantics = [#tpu.dimension_semantics<parallel>, #tpu.dimension_semantics<parallel>], iteration_bounds = array<i64: 2, 1>, scalar_prefetch = 0 : i64, scratch_operands = 0 : i64, tpu.core_type = #tpu.core_type<tc>, window_params = [{transform_indices = @transform_0, window_bounds = array<i64: 1, 1>}, {transform_indices = @transform_1, window_bounds = array<i64: 1, 128>}, {transform_indices = @transform_2, window_bounds = array<i64: 8, 128>}, {transform_indices = @transform_3, window_bounds = array<i64: 8, 128>}]} {
    %c0 = arith.constant 0 : index
    %c0_0 = arith.constant 0 : index
    %0 = memref.load %arg2[%c0, %c0_0] : memref<1x1xf32, #tpu.memory_space<smem>>
    %c0_1 = arith.constant 0 : index
    %c0_2 = arith.constant 0 : index
    %1 = vector.load %arg3[%c0_1, %c0_2] : memref<1x128xf32, #tpu.memory_space<vmem>>, vector<1x128xf32>
    %c0_3 = arith.constant 0 : index
    %c0_4 = arith.constant 0 : index
    %2 = vector.load %arg4[%c0_3, %c0_4] : memref<8x128xf32, #tpu.memory_space<vmem>>, vector<8x128xf32>
    %3 = vector.broadcast %1 : vector<1x128xf32> to vector<8x128xf32>
    %4 = arith.mulf %3, %2 : vector<8x128xf32>
    %5 = arith.negf %4 : vector<8x128xf32>
    %6 = math.exp %5 : vector<8x128xf32>
    %cst = arith.constant 1.000000e+00 : f32
    %7 = vector.broadcast %cst : f32 to vector<8x128xf32>
    %8 = arith.addf %7, %6 : vector<8x128xf32>
    %9 = arith.divf %7, %8 : vector<8x128xf32>
    %10 = vector.broadcast %0 : f32 to vector<8x128xf32>
    %11 = arith.mulf %10, %9 : vector<8x128xf32>
    %c0_5 = arith.constant 0 : index
    %c0_6 = arith.constant 0 : index
    %12 = vector.load %arg5[%c0_5, %c0_6] : memref<8x128xf32, #tpu.memory_space<vmem>>, vector<8x128xf32>
    tpu.vector_store %arg5[%c0_5, %c0_6], %11 {strides = array<i32>} : memref<8x128xf32, #tpu.memory_space<vmem>>, vector<8x128xf32>,
    return
  }
  func.func @transform_0(%arg0: i32, %arg1: i32) -> (i32, i32) {
    %c0_i32 = arith.constant 0 : i32
    %c0_i32_0 = arith.constant 0 : i32
    %c0_i32_1 = arith.constant 0 : i32
    return %c0_i32, %c0_i32_0 : i32, i32
  }
  func.func @transform_1(%arg0: i32, %arg1: i32) -> (i32, i32) {
    %c0_i32 = arith.constant 0 : i32
    %c0_i32_0 = arith.constant 0 : i32
    return %c0_i32, %arg0 : i32, i32
  }
  func.func @transform_2(%arg0: i32, %arg1: i32) -> (i32, i32) {
    %c0_i32 = arith.constant 0 : i32
    return %arg1, %arg0 : i32, i32
  }
  func.func @transform_3(%arg0: i32, %arg1: i32) -> (i32, i32) {
    %c0_i32 = arith.constant 0 : i32
    return %arg1, %arg0 : i32, i32
  }
}

</mosaic_0001>

<llo_original>
// kernel: tpu_custom_call.1
$region0: #{tpu_custom_call.1}
  #allocation0 [shape = 'u32[]', space=smem, size = 0x4, offset = 0x4, fixed_abs, tag = 'smem constant byte address 0x4 - core index']
  #allocation1 [shape = 'u32[144,128]{1,0:T(1,128)}', space=vmem, size = 0x12000, scoped, tag = 'internal scratch']
  #allocation2 [shape = 'f32[1,1]{1,0:T(1,128)S(6)}', space=smem, size = 0x200, scoped, tag = 'scoped memory for tpu_custom_call.1']
  %s0 = inlined_call_operand.<no memory space> [shape: f32[1,1], index: 0, kind: input, shape index: {}]
  %s1 = inlined_call_operand.vmem [shape: f32[1,256], index: 1, kind: input, shape index: {}]
  %s2 = inlined_call_operand.hbm [shape: f32[8,256], index: 2, kind: input, shape index: {}]
  %s3 = inlined_call_operand.hbm [shape: f32[8,256], index: 3, kind: output, shape index: {}]
  %s4 = sld [smem:[#allocation0]]
  $region49: #{tpu_custom_call.1} parent=0
    _
  %s6 = ssub.s32 1, %s4
  %s7 = scalar_select 0, %s6, %s4
  %8 = sst [smem:[#allocation2]] %s0
  $region1: #{tpu_custom_call.1} parent=0
    #allocation3 [shape = 'u8[8192]{0}', space=vmem, size = 0x2000, scoped, tag = 'input window, operand 2']
    #allocation4 [shape = 's32[2]{0}', space=sflag, size = 0x8, scoped, tag = 'scoped memory for tpu_custom_call.1']
    #allocation5 [shape = 's32[2]{0}', space=sflag, size = 0x8, scoped, tag = 'scoped memory for tpu_custom_call.1']
    #allocation6 [shape = 'u8[8192]{0}', space=vmem, size = 0x2000, scoped, tag = 'output window, operand 0']
    %9 = vsyncpa [#allocation4], 0
    %s10 = scalar_lea.sflag [#allocation4], 1
    %11 = vsyncpa %s10, 0
    %12 = vsyncpa [#allocation5], 0
    %s13 = scalar_lea.sflag [#allocation5], 1
    %14 = vsyncpa %s13, 0
    loop: start=0, step=1, limit=4
    $region2: #{tpu_custom_call.1} parent=1 // loop_pre_header
      _
    $region3: #{tpu_custom_call.1} parent=1 // loop_header
      %s16 = sphi 0, %s20
      %p17 = scmp.ge.s32.totalorder %s16, 4
      %s23 = sphi 0, %s35
      %s24 = sphi 0, %s31
      %s25 = sphi 0, %s23
      %s26 = sphi 0, %s24
      %s27 = sphi 0, %s25
      %s28 = sphi 0, %s26
      %s36 = sphi 0, %s36
      %s38 = sphi 0, %s36
      %s39 = sphi 0, %s38
      %s53 = sphi 0, %s39
      %s59 = sphi 0, %s61
      %s62 = sphi 0, %s59
      %s63 = sphi 0, %s62
      %s79 = sphi 0, %s63
      %s87 = sphi 0, %s89
      %s90 = sphi 0, %s87
      %s91 = sphi 0, %s90
      %s107 = sphi 0, %s91
      %s115 = sphi 0, %s117
      %s118 = sphi 0, %s115
      %s119 = sphi 0, %s118
      %s135 = sphi 0, %s119
    $region4: #{tpu_custom_call.1} parent=1 // loop_header_branch
      %19 = sbr.rel (%p17) target = $region8
    $region5: #{tpu_custom_call.1} parent=1 // loop_body
      %s21 = ssub.s32 %s16, 1
      %s22 = ssub.s32 %s16, 2
      %s29 = sadd.s32 1, %s24
      %p30 = scmp.ge.s32.totalorder %s29, 1
      %s31 = scalar_select %p30, 0, %s29
      %s32 = sadd.s32 1, %s23
      %s33 = scalar_select %p30, %s32, %s23
      %p34 = scmp.ge.s32.totalorder %s33, 2
      %s35 = scalar_select %p34, 0, %s33
      %s37 = sadd.s32 %s36, 1
      %p40 = scmp.eq.s32.totalorder %s16, 1
      %p41 = scmp.ne.s32.totalorder %s36, %s38
      %p42 = scmp.eq.s32.totalorder %s16, 0
      %p43 = por %p41, %p42
      %p44 = scmp.ne.s32.totalorder %s36, %s38
      %p45 = scmp.eq.s32.totalorder %s21, 1
      %p46 = por %p44, %p45
      %p47 = scmp.ne.s32.totalorder %s38, %s39
      %p48 = scmp.eq.s32.totalorder %s21, 0
      %p49 = por %p47, %p48
      %p50 = scmp.ne.s32.totalorder %s38, %s39
      %p51 = scmp.eq.s32.totalorder %s22, 1
      %p52 = por %p50, %p51
      %p54 = scmp.ne.s32.totalorder %s39, %s53
      %p55 = scmp.eq.s32.totalorder %s22, 0
      %p56 = por %p54, %p55
      %s57 = ssub.s32 %s23, %s35
      %p58 = scmp.eq.s32.totalorder %s57, 0
      %s60 = sadd.s32 %s59, 1
      %s61 = scalar_select %p58, %s59, %s60
      %p64 = pneg %p58
      %p65 = scmp.eq.s32.totalorder %s16, 1
      %p66 = por %p64, %p65
      %p67 = scmp.ne.s32.totalorder %s59, %s62
      %p68 = scmp.eq.s32.totalorder %s16, 0
      %p69 = por %p67, %p68
      %p70 = scmp.ne.s32.totalorder %s59, %s62
      %p71 = scmp.eq.s32.totalorder %s21, 1
      %p72 = por %p70, %p71
      %p73 = scmp.ne.s32.totalorder %s62, %s63
      %p74 = scmp.eq.s32.totalorder %s21, 0
      %p75 = por %p73, %p74
      %p76 = scmp.ne.s32.totalorder %s62, %s63
      %p77 = scmp.eq.s32.totalorder %s22, 1
      %p78 = por %p76, %p77
      %p80 = scmp.ne.s32.totalorder %s63, %s79
      %p81 = scmp.eq.s32.totalorder %s22, 0
      %p82 = por %p80, %p81
      %s83 = ssub.s32 %s24, %s31
      %s84 = ssub.s32 %s23, %s35
      %s85 = sor.u32 %s83, %s84
      %p86 = scmp.eq.s32.totalorder %s85, 0
      %s88 = sadd.s32 %s87, 1
      %s89 = scalar_select %p86, %s87, %s88
      %p92 = pneg %p86
      %p93 = scmp.eq.s32.totalorder %s16, 1
      %p94 = por %p92, %p93
      %p95 = scmp.ne.s32.totalorder %s87, %s90
      %p96 = scmp.eq.s32.totalorder %s16, 0
      %p97 = por %p95, %p96
      %p98 = scmp.ne.s32.totalorder %s87, %s90
      %p99 = scmp.eq.s32.totalorder %s21, 1
      %p100 = por %p98, %p99
      %p101 = scmp.ne.s32.totalorder %s90, %s91
      %p102 = scmp.eq.s32.totalorder %s21, 0
      %p103 = por %p101, %p102
      %p104 = scmp.ne.s32.totalorder %s90, %s91
      %p105 = scmp.eq.s32.totalorder %s22, 1
      %p106 = por %p104, %p105
      %p108 = scmp.ne.s32.totalorder %s91, %s107
      %p109 = scmp.eq.s32.totalorder %s22, 0
      %p110 = por %p108, %p109
      %s111 = ssub.s32 %s24, %s31
      %s112 = ssub.s32 %s23, %s35
      %s113 = sor.u32 %s111, %s112
      %p114 = scmp.eq.s32.totalorder %s113, 0
      %s116 = sadd.s32 %s115, 1
      %s117 = scalar_select %p114, %s115, %s116
      %p120 = pneg %p114
      %p121 = scmp.eq.s32.totalorder %s16, 1
      %p122 = por %p120, %p121
      %p123 = scmp.ne.s32.totalorder %s115, %s118
      %p124 = scmp.eq.s32.totalorder %s16, 0
      %p125 = por %p123, %p124
      %p126 = scmp.ne.s32.totalorder %s115, %s118
      %p127 = scmp.eq.s32.totalorder %s21, 1
      %p128 = por %p126, %p127
      %p129 = scmp.ne.s32.totalorder %s118, %s119
      %p130 = scmp.eq.s32.totalorder %s21, 0
      %p131 = por %p129, %p130
      %p132 = scmp.ne.s32.totalorder %s118, %s119
      %p133 = scmp.eq.s32.totalorder %s22, 1
      %p134 = por %p132, %p133
      %p136 = scmp.ne.s32.totalorder %s119, %s135
      %p137 = scmp.eq.s32.totalorder %s22, 0
      %p138 = por %p136, %p137
      %p139 = scmp.le.s32.totalorder 1, %s16
      %p140 = scmp.lt.s32.totalorder %s16, 3
      %p141 = pnand %p139, %p140
      %p142 = pneg %p141
      // Predicated region
      $region9: #{tpu_custom_call.1} parent=5 // pred_check
        _
      $region10: #{tpu_custom_call.1} parent=5 // pred_check_branch
        %144 = sbr.rel (%p141) target = $region12
      $region11: #{tpu_custom_call.1} parent=5 // pred_region
        %s145 = ssub.s32 %s16, 1
        // Predicated region
        $region13: #{tpu_custom_call.1} parent=11 // pred_check
          %p146 = pneg %p49
        $region14: #{tpu_custom_call.1} parent=11 // pred_check_branch
          %148 = sbr.rel (%p146) target = $region16
        $region15: #{tpu_custom_call.1} parent=11 // pred_region
          _
        $region16: #{tpu_custom_call.1} parent=11 // pred_fallthru
          _
      $region12: #{tpu_custom_call.1} parent=5 // pred_fallthru
        _
      %p149 = scmp.lt.s32.totalorder %s16, 2
      // Predicated region
      $region17: #{tpu_custom_call.1} parent=5 // pred_check
        %p150 = pneg %p149
      $region18: #{tpu_custom_call.1} parent=5 // pred_check_branch
        %152 = sbr.rel (%p150) target = $region20
      $region19: #{tpu_custom_call.1} parent=5 // pred_region
        // Predicated region
        $region21: #{tpu_custom_call.1} parent=19 // pred_check
          %p153 = pneg %p69
        $region22: #{tpu_custom_call.1} parent=19 // pred_check_branch
          %155 = sbr.rel (%p153) target = $region24
        $region23: #{tpu_custom_call.1} parent=19 // pred_region
          %p156 = scmp.lt.s32.totalorder %s23, 1
          %s157 = scalar_select %p156, %s23, 1
          %s158 = scalar_lea.vmem %s1, %s157
        $region24: #{tpu_custom_call.1} parent=19 // pred_fallthru
          _
        // Predicated region
        $region25: #{tpu_custom_call.1} parent=19 // pred_check
          %p159 = pneg %p97
        $region26: #{tpu_custom_call.1} parent=19 // pred_check_branch
          %161 = sbr.rel (%p159) target = $region28
        $region27: #{tpu_custom_call.1} parent=19 // pred_region
          %s162 = sand.u32 %s87, 1
          %s163 = scalar_lea.sflag [#allocation4], %s162
          %s164 = sand.u32 %s87, 1
          %s165 = smul.addr %s164, 8
          %s166 = scalar_lea.vmem [#allocation3], %s165
          %s168 = ssub.s32 128, 128
          %169 = vsyncadd %s163, %s168
          %s170 = smul.addr %s24, 2
          %s171 = sadd.s32 %s23, %s170
          %s172 = smul.addr %s171, 128
          %s173 = scalar_lea.hbm %s2, %s172
          %s175 = sshll.u32 %s166, 4
          %s176 = int_to_ptr.vmem [resolvable:$true] %s175
          %178 = dma.hbm_to_vmem [thread:$0]  %s173, 128, %s176, %s163
        $region28: #{tpu_custom_call.1} parent=19 // pred_fallthru
          _
      $region20: #{tpu_custom_call.1} parent=5 // pred_fallthru
        _
      %p179 = scmp.le.s32.totalorder 1, %s16
      %p180 = scmp.lt.s32.totalorder %s16, 3
      %p181 = pnand %p179, %p180
      %p182 = pneg %p181
      // Predicated region
      $region29: #{tpu_custom_call.1} parent=5 // pred_check
        _
      $region30: #{tpu_custom_call.1} parent=5 // pred_check_branch
        %184 = sbr.rel (%p181) target = $region32
      $region31: #{tpu_custom_call.1} parent=5 // pred_region
        %s185 = ssub.s32 %s16, 1
        %s186 = sand.u32 %s90, 1
        %s187 = scalar_lea.sflag [#allocation4], %s186
        %s188 = sand.u32 %s90, 1
        %s189 = smul.addr %s188, 8
        %s190 = scalar_lea.vmem [#allocation3], %s189
        // Predicated region
        $region33: #{tpu_custom_call.1} parent=31 // pred_check
          %p191 = pneg %p103
        $region34: #{tpu_custom_call.1} parent=31 // pred_check_branch
          %193 = sbr.rel (%p191) target = $region36
        $region35: #{tpu_custom_call.1} parent=31 // pred_region
          %194 = dma.done %s187, 128
        $region36: #{tpu_custom_call.1} parent=31 // pred_fallthru
          _
        %p195 = pneg %p49
        %p196 = pneg %p46
        %p197 = scmp.lt.s32.totalorder %s25, 1
        %s198 = scalar_select %p197, %s25, 1
        %s199 = scalar_lea.vmem %s1, %s198
        %p200 = pneg %p75
        %p201 = pneg %p72
        %s202 = sand.u32 %s90, 1
        %s203 = scalar_lea.sflag [#allocation4], %s202
        %s204 = sand.u32 %s90, 1
        %s205 = smul.addr %s204, 8
        %s206 = scalar_lea.vmem [#allocation3], %s205
        %p207 = pneg %p103
        %p208 = pneg %p100
        %p209 = pneg %p131
        %p210 = pneg %p128
        %s211 = sand.u32 %s118, 1
        %s212 = scalar_lea.sflag [#allocation5], %s211
        %s213 = sand.u32 %s118, 1
        %s214 = smul.addr %s213, 8
        %s215 = scalar_lea.vmem [#allocation6], %s214
        %p216 = scmp.lt.s32.totalorder %s25, 1
        %s217 = scalar_select %p216, %s25, 1
        %s218 = scalar_lea.vmem %s1, %s217
        %s219 = sld [smem:[#allocation2]]
        %v220 = vld [vmem:[%s218] sm:$0x1]
        %v221 = vld [vmem:[%s190] sm:$0xff]
        %v223 = vlaneseq
        %v224 = vshrl.u32 %v223, 7
        %v225 = vsub.s32 0, %v224
        %v226 = vrot.slane %v220, %v225
        %v228 = vmul.f32 %v226, %v221
        %v229 = vxor.u32 %v228, 2147483648
        %v230 = vmul.f32 %v229, 1.442695
        %v231 = vpow.pop %v230
        %v232 = vadd.f32 %v231, 1.0
        %v233 = vrcp.pop %v232
        %v234 = vmul.f32 1.0, %v233
        %v235 = vstv %s219
        %v236 = vmul.f32 %v235, %v234
        %237 = vst [vmem:[%s215] sm:$0xff] %v236
        %s238 = sand.u32 %s118, 1
        %s239 = scalar_lea.sflag [#allocation5], %s238
        %s240 = sand.u32 %s118, 1
        %s241 = smul.addr %s240, 8
        %s242 = scalar_lea.vmem [#allocation6], %s241
        // Predicated region
        $region37: #{tpu_custom_call.1} parent=31 // pred_check
          %p243 = pneg %p128
        $region38: #{tpu_custom_call.1} parent=31 // pred_check_branch
          %245 = sbr.rel (%p243) target = $region40
        $region39: #{tpu_custom_call.1} parent=31 // pred_region
          %s247 = ssub.s32 128, 128
          %248 = vsyncadd %s239, %s247
          %s249 = smul.addr %s26, 2
          %s250 = sadd.s32 %s25, %s249
          %s251 = smul.addr %s250, 128
          %s252 = scalar_lea.hbm %s3, %s251
          %s254 = sshll.u32 %s242, 4
          %s255 = int_to_ptr.vmem [resolvable:$true] %s254
          %257 = dma.vmem_to_hbm [thread:$0]  %s255, 128, %s252, %s239
        $region40: #{tpu_custom_call.1} parent=31 // pred_fallthru
          _
      $region32: #{tpu_custom_call.1} parent=5 // pred_fallthru
        _
      %p258 = scmp.le.s32.totalorder 2, %s16
      // Predicated region
      $region41: #{tpu_custom_call.1} parent=5 // pred_check
        %p259 = pneg %p258
      $region42: #{tpu_custom_call.1} parent=5 // pred_check_branch
        %261 = sbr.rel (%p259) target = $region44
      $region43: #{tpu_custom_call.1} parent=5 // pred_region
        %s262 = ssub.s32 %s16, 2
        // Predicated region
        $region45: #{tpu_custom_call.1} parent=43 // pred_check
          %p263 = pneg %p134
        $region46: #{tpu_custom_call.1} parent=43 // pred_check_branch
          %265 = sbr.rel (%p263) target = $region48
        $region47: #{tpu_custom_call.1} parent=43 // pred_region
          %s266 = sand.u32 %s119, 1
          %s267 = scalar_lea.sflag [#allocation5], %s266
          %s268 = sand.u32 %s119, 1
          %s269 = smul.addr %s268, 8
          %s270 = scalar_lea.vmem [#allocation6], %s269
          %271 = dma.done %s267, 128
        $region48: #{tpu_custom_call.1} parent=43 // pred_fallthru
          _
      $region44: #{tpu_custom_call.1} parent=5 // pred_fallthru
        _
    $region6: #{tpu_custom_call.1} parent=1 // loop_footer
      %s20 = sadd.s32 1, %s16
    $region7: #{tpu_custom_call.1} parent=1 // loop_footer_branch
      %15 = sbr.rel target = $region3
    $region8: #{tpu_custom_call.1} parent=1 // loop_exit
      _
    %272 = vsyncpa [#allocation4], 1
    %s273 = scalar_lea.sflag [#allocation4], 1
    %274 = vsyncpa %s273, 1
    %275 = vsyncpa [#allocation5], 1
    %s276 = scalar_lea.sflag [#allocation5], 1
    %277 = vsyncpa %s276, 1

</llo_original>
